<compile_context>
chip_gen: v5e
topology: v5e:2x2
jax: 0.10.0
libtpu: 0.0.40
codegen_flags: <defaults>
</compile_context>

<pallas_src>
import math

import jax
import jax.numpy as jnp
from jax.experimental import pallas as pl
from jax.experimental.pallas import tpu as pltpu

_MiB = 1024 * 1024


def _round_up(x, m):
    return ((x + m - 1) // m) * m


def _tpu_generation():
    try:
        kind = jax.devices()[0].device_kind.lower()
    except Exception:
        return "unknown"
    if "v7" in kind or "7x" in kind:
        return "v7x"
    if "v5 lite" in kind or "v5lite" in kind or "v5e" in kind:
        return "v5e"
    if "v6" in kind:
        return "v6e"
    return "other"


def _vmem_need(bn, bh, dim, x_bytes, w_bytes, o_bytes):
    """Approximate VMEM footprint of one pipeline configuration."""
    return (2 * bn * dim * x_bytes          # x tiles (double-buffered)
            + 2 * 2 * dim * bh * w_bytes    # both weight tiles (double-buffered)
            + 2 * bn * dim * o_bytes        # output tiles (double-buffered)
            + bn * dim * 4                  # f32 accumulator scratch
            + bn * bh * 4)                  # f32 relu^2 intermediate


def mlp_kernel(x_ref, wfc_t_ref, wproj_t_ref, o_ref, acc_ref):
    # x_ref:       (bn, dim)   token tile (already in the weight dtype)
    # wfc_t_ref:   (dim, bh)   slice of c_fc weight (pre-transposed)
    # wproj_t_ref: (bh, dim)   slice of c_proj weight (pre-transposed)
    # acc_ref:     (bn, dim)   f32 accumulator, persistent across the hdim axis
    k = pl.program_id(1)

    @pl.when(k == 0)
    def _():
        acc_ref[...] = jnp.zeros_like(acc_ref)

    h = jnp.dot(x_ref[...], wfc_t_ref[...], preferred_element_type=jnp.float32)
    h = jnp.maximum(h, 0.0)
    h = h * h                                   # relu(h).square(), in f32
    acc_ref[...] += jnp.dot(h.astype(wproj_t_ref.dtype), wproj_t_ref[...],
                            preferred_element_type=jnp.float32)

    @pl.when(k == pl.num_programs(1) - 1)
    def _():
        o_ref[...] = acc_ref[...].astype(o_ref.dtype)


def mlp_forward(x, wfc_t, wproj_t, *, block_n=None, block_h=None):
    """Fused MLP forward: relu(x @ wfc_t)^2 @ wproj_t.

    x:       (..., dim)
    wfc_t:   (dim, hdim)   c_fc weight, stored pre-transposed
    wproj_t: (hdim, dim)   c_proj weight, stored pre-transposed
    """
    orig_shape = x.shape
    out_dtype = x.dtype
    dim = x.shape[-1]
    hdim = wfc_t.shape[1]
    assert wfc_t.shape == (dim, hdim)
    assert wproj_t.shape == (hdim, dim)
    assert wproj_t.dtype == wfc_t.dtype

    gen = _tpu_generation()
    if block_n is None:
        # v5e's roofline crossover (~240 flop/B) is already cleared at bn=512;
        # v6e/v7x benefit from 1024-row token tiles.
        block_n = 512 if gen == "v5e" else 1024
    if block_h is None:
        block_h = 1024
    if gen == "v7x":
        vmem_cap = 48 * _MiB                  # 64 MiB physical; leave headroom
        token_sem = pltpu.CORE_PARALLEL       # shard token tiles over 2 TCs
    else:
        vmem_cap = 100 * _MiB                 # 128 MiB physical on v5e/v6e
        token_sem = pltpu.PARALLEL
    budget = int(0.85 * vmem_cap)

    # Cast activations to the weight dtype in the wrapper (CastedLinear feeds
    # the MXU in the weight dtype); halves x DMA bytes for f32-in / bf16-weight.
    xf = x.reshape(-1, dim).astype(wfc_t.dtype)
    n_tokens = xf.shape[0]

    x_bytes = jnp.dtype(xf.dtype).itemsize
    w_bytes = jnp.dtype(wfc_t.dtype).itemsize
    o_bytes = jnp.dtype(out_dtype).itemsize

    sublane = 16 if xf.dtype == jnp.bfloat16 else 8
    bn = min(block_n, _round_up(n_tokens, sublane))

    # ---- Tile selection -----------------------------------------------------
    # Fast path: keep both weights resident in VMEM (bh = hdim) so they are
    # DMA'd exactly once for the whole call.
    bh = None
    bn_try = bn
    while bn_try >= sublane:
        if _vmem_need(bn_try, hdim, dim, x_bytes, w_bytes, o_bytes) <= budget:
            bh = hdim
            bn = bn_try
            break
        if bn_try <= max(256, sublane):
            break
        bn_try = max(sublane, _round_up(bn_try // 2, sublane))

    if bh is None:
        # Streaming path: largest multiple of 128 (<= block_h) dividing hdim.
        if hdim % 128 != 0:
            bh = hdim   # (8,128) layout constraint forces the full hdim here
        else:
            bh = 128
            top = min(block_h, hdim)
            for cand in range(top - top % 128, 127, -128):
                if hdim % cand == 0:
                    bh = cand
                    break
        while bn > sublane and _vmem_need(bn, bh, dim, x_bytes, w_bytes,
                                          o_bytes) > budget:
            bn = max(sublane, _round_up(bn // 2, sublane))

    n_pad = _round_up(n_tokens, bn)
    if n_pad != n_tokens:
        xf = jnp.pad(xf, ((0, n_pad - n_tokens), (0, 0)))
    n_token_tiles = n_pad // bn

    need = _vmem_need(bn, bh, dim, x_bytes, w_bytes, o_bytes)
    vmem_limit = int(min(max(int(need * 1.5), 16 * _MiB), vmem_cap))

    weight_bytes = 2 * dim * hdim * w_bytes
    weight_traffic = weight_bytes if bh == hdim else weight_bytes * n_token_tiles
    cost = pl.CostEstimate(
        flops=4 * n_pad * dim * hdim,             # two matmuls
        transcendentals=0,
        bytes_accessed=int(n_pad * dim * x_bytes      # read x
                           + n_pad * dim * o_bytes    # write out
                           + weight_traffic),         # actual weight traffic
    )

    out = pl.pallas_call(
        mlp_kernel,
        out_shape=jax.ShapeDtypeStruct((n_pad, dim), out_dtype),
        grid_spec=pltpu.PrefetchScalarGridSpec(
            num_scalar_prefetch=0,
            grid=(n_token_tiles, hdim // bh),
            in_specs=[
                pl.BlockSpec((bn, dim), lambda i, k: (i, 0)),
                pl.BlockSpec((dim, bh), lambda i, k: (0, k)),
                pl.BlockSpec((bh, dim), lambda i, k: (k, 0)),
            ],
            out_specs=pl.BlockSpec((bn, dim), lambda i, k: (i, 0)),
            scratch_shapes=[pltpu.VMEM((bn, dim), jnp.float32)],
        ),
        compiler_params=pltpu.CompilerParams(
            dimension_semantics=(token_sem, pltpu.ARBITRARY),
            vmem_limit_bytes=vmem_limit,
        ),
        cost_estimate=cost,
    )(xf, wfc_t, wproj_t)

    if n_pad != n_tokens:
        out = out[:n_tokens]
    return out.reshape(orig_shape)


def init_mlp_params(key, dim, dtype=jnp.bfloat16):
    """Deterministic init matching the PyTorch module, stored PRE-TRANSPOSED.

    c_fc:   CastedLinear.reset_parameters -> uniform(-bound, bound),
            bound = sqrt(3) * 0.5 * dim**-0.5; stored as (dim, hdim).
    c_proj: weight zeroed in MLP.__init__; stored as (hdim, dim).
    Weights are kept in bf16 by default (CastedLinear usage in nanogpt).
    """
    hdim = 4 * dim
    std = 0.5 * dim ** (-0.5)
    bound = math.sqrt(3.0) * std
    wfc_t = jax.random.uniform(key, (dim, hdim), dtype=jnp.float32,
                               minval=-bound, maxval=bound).astype(dtype)
    wproj_t = jnp.zeros((hdim, dim), dtype=dtype)
    return wfc_t, wproj_t


if __name__ == "__main__":
    key = jax.random.PRNGKey(0)
    k_x, k_fc, k_proj = jax.random.split(key, 3)

    batch, seq, dim = 2, 8, 32          # hdim = 128
    hdim = 4 * dim
    dtype = jnp.bfloat16
    x = jax.random.normal(k_x, (batch, seq, dim), dtype=jnp.float32).astype(dtype)

    # Module-default parameters: c_proj is zero-initialised -> output is 0.
    wfc_t, wproj_t = init_mlp_params(k_fc, dim, dtype=dtype)
    out0 = jax.block_until_ready(mlp_forward(x, wfc_t, wproj_t))
    assert out0.shape == x.shape and out0.dtype == dtype
    assert jnp.allclose(out0.astype(jnp.float32), 0.0)

    # Use a non-zero c_proj so the numeric check exercises both matmuls.
    wproj_t = jax.random.uniform(k_proj, (hdim, dim), dtype=jnp.float32,
                                 minval=-0.02, maxval=0.02).astype(dtype)
    out = jax.block_until_ready(mlp_forward(x, wfc_t, wproj_t))

    # Pure-JAX reference mirroring the kernel's bf16-in / f32-accumulate math.
    x32 = x.astype(jnp.float32)
    wfc32 = wfc_t.astype(jnp.float32)
    wproj32 = wproj_t.astype(jnp.float32)
    h = jnp.maximum(x32 @ wfc32, 0.0) ** 2
    h = h.astype(dtype).astype(jnp.float32)      # kernel feeds h to the MXU in bf16
    ref = h @ wproj32

    assert out.shape == x.shape
    err = float(jnp.max(jnp.abs(out.astype(jnp.float32) - ref)))
    assert jnp.allclose(out.astype(jnp.float32), ref, atol=5e-3, rtol=5e-2), err

    print("KERNEL_OK")
</pallas_src>

<mosaic_0001>
module attributes {stable_mosaic.version = 11 : i64} {
  func.func @mlp_kernel(%arg0: i32, %arg1: i32, %arg2: memref<16x32xbf16, #tpu.memory_space<vmem>>, %arg3: memref<32x128xbf16, #tpu.memory_space<vmem>>, %arg4: memref<128x32xbf16, #tpu.memory_space<vmem>>, %arg5: memref<16x32xbf16, #tpu.memory_space<vmem>>, %arg6: memref<16x32xf32, #tpu.memory_space<vmem>>) attributes {dimension_semantics = [#tpu.dimension_semantics<parallel>, #tpu.dimension_semantics<arbitrary>], iteration_bounds = array<i64: 1, 1>, scalar_prefetch = 0 : i64, scratch_operands = 1 : i64, tpu.core_type = #tpu.core_type<tc>, window_params = [{transform_indices = @transform_0, window_bounds = array<i64: 16, 32>}, {transform_indices = @transform_1, window_bounds = array<i64: 32, 128>}, {transform_indices = @transform_2, window_bounds = array<i64: 128, 32>}, {transform_indices = @transform_3, window_bounds = array<i64: 16, 32>}]} {
    %c0_i32 = arith.constant 0 : i32
    %0 = arith.cmpi eq, %arg1, %c0_i32 : i32
    %1 = arith.extui %0 : i1 to i32
    %c0_i32_0 = arith.constant 0 : i32
    %2 = arith.cmpi ne, %1, %c0_i32_0 : i32
    scf.if %2 {
      %cst_14 = arith.constant 0.000000e+00 : f32
      %18 = vector.broadcast %cst_14 : f32 to vector<16x32xf32>
      %c0_15 = arith.constant 0 : index
      %c0_16 = arith.constant 0 : index
      %19 = vector.load %arg6[%c0_15, %c0_16] : memref<16x32xf32, #tpu.memory_space<vmem>>, vector<16x32xf32>
      tpu.vector_store %arg6[%c0_15, %c0_16], %18 {strides = array<i32>} : memref<16x32xf32, #tpu.memory_space<vmem>>, vector<16x32xf32>,
    } else {
    }
    %c0 = arith.constant 0 : index
    %c0_1 = arith.constant 0 : index
    %3 = vector.load %arg2[%c0, %c0_1] : memref<16x32xbf16, #tpu.memory_space<vmem>>, vector<16x32xbf16>
    %c0_2 = arith.constant 0 : index
    %c0_3 = arith.constant 0 : index
    %4 = vector.load %arg3[%c0_2, %c0_3] : memref<32x128xbf16, #tpu.memory_space<vmem>>, vector<32x128xbf16>
    %cst = arith.constant dense<0.000000e+00> : vector<16x128xf32>
    %5 = tpu.matmul %3, %4, %cst {dimension_numbers = #tpu.dot_dimension_numbers<[1], [0], [0], [1], [0, 0, 1, 1], [], []>} : vector<16x32xbf16>, vector<32x128xbf16>, vector<16x128xf32> -> vector<16x128xf32>
    %cst_4 = arith.constant 0.000000e+00 : f32
    %6 = vector.broadcast %cst_4 : f32 to vector<16x128xf32>
    %7 = arith.maximumf %5, %6 : vector<16x128xf32>
    %8 = arith.mulf %7, %7 : vector<16x128xf32>
    %c0_5 = arith.constant 0 : index
    %c0_6 = arith.constant 0 : index
    %9 = vector.load %arg6[%c0_5, %c0_6] : memref<16x32xf32, #tpu.memory_space<vmem>>, vector<16x32xf32>
    %10 = arith.truncf %8 : vector<16x128xf32> to vector<16x128xbf16>
    %c0_7 = arith.constant 0 : index
    %c0_8 = arith.constant 0 : index
    %11 = vector.load %arg4[%c0_7, %c0_8] : memref<128x32xbf16, #tpu.memory_space<vmem>>, vector<128x32xbf16>
    %cst_9 = arith.constant dense<0.000000e+00> : vector<16x32xf32>
    %12 = tpu.matmul %10, %11, %cst_9 {dimension_numbers = #tpu.dot_dimension_numbers<[1], [0], [0], [1], [0, 0, 1, 1], [], []>} : vector<16x128xbf16>, vector<128x32xbf16>, vector<16x32xf32> -> vector<16x32xf32>
    %13 = arith.addf %9, %12 : vector<16x32xf32>
    %c0_10 = arith.constant 0 : index
    %c0_11 = arith.constant 0 : index
    %14 = vector.load %arg6[%c0_10, %c0_11] : memref<16x32xf32, #tpu.memory_space<vmem>>, vector<16x32xf32>
    tpu.vector_store %arg6[%c0_10, %c0_11], %13 {strides = array<i32>} : memref<16x32xf32, #tpu.memory_space<vmem>>, vector<16x32xf32>,
    %c0_i32_12 = arith.constant 0 : i32
    %15 = arith.cmpi eq, %arg1, %c0_i32_12 : i32
    %16 = arith.extui %15 : i1 to i32
    %c0_i32_13 = arith.constant 0 : i32
    %17 = arith.cmpi ne, %16, %c0_i32_13 : i32
    scf.if %17 {
      %c0_14 = arith.constant 0 : index
      %c0_15 = arith.constant 0 : index
      %18 = vector.load %arg6[%c0_14, %c0_15] : memref<16x32xf32, #tpu.memory_space<vmem>>, vector<16x32xf32>
      %19 = arith.truncf %18 : vector<16x32xf32> to vector<16x32xbf16>
      %c0_16 = arith.constant 0 : index
      %c0_17 = arith.constant 0 : index
      %20 = vector.load %arg5[%c0_16, %c0_17] : memref<16x32xbf16, #tpu.memory_space<vmem>>, vector<16x32xbf16>
      tpu.vector_store %arg5[%c0_16, %c0_17], %19 {strides = array<i32>} : memref<16x32xbf16, #tpu.memory_space<vmem>>, vector<16x32xbf16>,
    } else {
    }
    return
  }
  func.func @transform_0(%arg0: i32, %arg1: i32) -> (i32, i32) {
    %c0_i32 = arith.constant 0 : i32
    %c0_i32_0 = arith.constant 0 : i32
    return %arg0, %c0_i32 : i32, i32
  }
  func.func @transform_1(%arg0: i32, %arg1: i32) -> (i32, i32) {
    %c0_i32 = arith.constant 0 : i32
    %c0_i32_0 = arith.constant 0 : i32
    return %c0_i32, %arg1 : i32, i32
  }
  func.func @transform_2(%arg0: i32, %arg1: i32) -> (i32, i32) {
    %c0_i32 = arith.constant 0 : i32
    %c0_i32_0 = arith.constant 0 : i32
    return %arg1, %c0_i32 : i32, i32
  }
  func.func @transform_3(%arg0: i32, %arg1: i32) -> (i32, i32) {
    %c0_i32 = arith.constant 0 : i32
    %c0_i32_0 = arith.constant 0 : i32
    return %arg0, %c0_i32 : i32, i32
  }
}

</mosaic_0001>

<llo_original>
// kernel: tpu_custom_call.1
$region0: #{tpu_custom_call.1}
  #allocation0 [shape = 'u32[]', space=smem, size = 0x4, offset = 0x4, fixed_abs, tag = 'smem constant byte address 0x4 - core index']
  #allocation1 [shape = 'u32[72,128]{1,0:T(1,128)}', space=vmem, size = 0x9000, scoped, tag = 'internal scratch']
  #allocation2 [shape = 'f32[16,32]{1,0:T(8,128)}', space=vmem, size = 0x2000, scoped, tag = 'scratch operand']
  %s0 = inlined_call_operand.vmem [shape: bf16[16,32], index: 0, kind: input, shape index: {}]
  %s1 = inlined_call_operand.vmem [shape: bf16[32,128], index: 1, kind: input, shape index: {}]
  %s2 = inlined_call_operand.vmem [shape: bf16[128,32], index: 2, kind: input, shape index: {}]
  %s3 = inlined_call_operand.hbm [shape: bf16[16,32], index: 3, kind: output, shape index: {}]
  %s4 = sld [smem:[#allocation0]]
  $region30: #{tpu_custom_call.1} parent=0
    _
  %s6 = ssub.s32 1, %s4
  %s7 = scalar_select 0, %s6, %s4
  $region1: #{tpu_custom_call.1} parent=0
    #allocation3 [shape = 'u8[4096]{0}', space=vmem, size = 0x1000, scoped, tag = 'output window, operand 0, single buffered']
    #allocation4 [shape = 's32[1]{0}', space=sflag, size = 0x4, scoped, tag = 'scoped memory for tpu_custom_call.1']
    %8 = vsyncpa [#allocation4], 0
    // Predicated region
    $region2: #{tpu_custom_call.1} parent=1 // pred_check
      _
    $region3: #{tpu_custom_call.1} parent=1 // pred_check_branch
      %10 = sbr.rel (0) target = $region5
    $region4: #{tpu_custom_call.1} parent=1 // pred_region
      _
    $region5: #{tpu_custom_call.1} parent=1 // pred_fallthru
      _
    // Predicated region
    $region6: #{tpu_custom_call.1} parent=1 // pred_check
      _
    $region7: #{tpu_custom_call.1} parent=1 // pred_check_branch
      %12 = sbr.rel (0) target = $region9
    $region8: #{tpu_custom_call.1} parent=1 // pred_region
      _
    $region9: #{tpu_custom_call.1} parent=1 // pred_fallthru
      _
    // Predicated region
    $region10: #{tpu_custom_call.1} parent=1 // pred_check
      _
    $region11: #{tpu_custom_call.1} parent=1 // pred_check_branch
      %14 = sbr.rel (0) target = $region13
    $region12: #{tpu_custom_call.1} parent=1 // pred_region
      _
    $region13: #{tpu_custom_call.1} parent=1 // pred_fallthru
      _
    %p16 = scmp.eq.s32.totalorder 0, 0
    // Predicated region
    $region14: #{tpu_custom_call.1} parent=1 // pred_check
      %p17 = pneg %p16
    $region15: #{tpu_custom_call.1} parent=1 // pred_check_branch
      %19 = sbr.rel (%p17) target = $region17
    $region16: #{tpu_custom_call.1} parent=1 // pred_region
      %vm20 = vcmask 261120
      %21 = vst.msk [vmem:[#allocation2] sm:$0xff] %vm20, 0.0
      %22 = vst.msk [vmem:[#allocation2 + $0x8] sm:$0xff] %vm20, 0.0
    $region17: #{tpu_custom_call.1} parent=1 // pred_fallthru
      _
    %v23 = vld [vmem:[%s0] sm:$0xf]
    %v24 = vld [vmem:[%s0 + $0x4] sm:$0xf]
    %v25 = vld [vmem:[%s1] sm:$0xf]
    %v26 = vld [vmem:[%s1 + $0x4] sm:$0xf]
    %v27 = vld [vmem:[%s1 + $0x8] sm:$0xf]
    %v28 = vld [vmem:[%s1 + $0xc] sm:$0xf]
    %v31 = vunpack.c.l.b16 %v23
    %v32 = vunpack.c.l.b16 %v24
    %v33 = vpack.c.b16 %v32, %v31
    %v38 = vunpack.c.l.b16 %v25
    %v39 = vunpack.c.l.b16 %v26
    %v40 = vunpack.c.l.b16 %v27
    %v41 = vunpack.c.l.b16 %v28
    %v42 = vpack.c.b16 %v39, %v38
    %v43 = vpack.c.b16 %v41, %v40
    %vm46 = vcmask 261120
    %v48 = vsel %vm46, %v33, 0
    %50 = vmatpush.bf16.msra.mxu0 0
    %51 = vmatpush.bf16.msra.mxu0 0
    %52 = vmatpush.bf16.msra.mxu0 0
    %53 = vmatpush.bf16.msra.mxu0 0
    %54 = vmatpush.bf16.msra.mxu0 0
    %55 = vmatpush.bf16.msra.mxu0 0
    %56 = vmatpush.bf16.msra.mxu0 %v43
    %57 = vmatpush.bf16.msra.mxu0 %v42
    %58 = vmatmul.bf16.gmra.mxu0 %v48
    %v59 = vpop.f32.mrf.mxu0
    %v60 = vadd.f32 0.0, %v59
    %v61 = vpop.f32.mrf.mxu0
    %v62 = vadd.f32 0.0, %v61
    %63 = vdwg.mxu0
    %v64 = vmax.f32 %v60, 0.0
    %v65 = vmax.f32 %v62, 0.0
    %v66 = vmul.f32 %v64, %v64
    %v67 = vmul.f32 %v65, %v65
    %v68 = vld [vmem:[#allocation2] sm:$0xff]
    %v69 = vld [vmem:[#allocation2 + $0x8] sm:$0xff]
    %v70 = vpack.c.bf16 %v67, %v66
    %v71 = vld [vmem:[%s2] sm:$0xf]
    %v72 = vld [vmem:[%s2 + $0x4] sm:$0xf]
    %v73 = vld [vmem:[%s2 + $0x8] sm:$0xf]
    %v74 = vld [vmem:[%s2 + $0xc] sm:$0xf]
    %v75 = vld [vmem:[%s2 + $0x10] sm:$0xf]
    %v76 = vld [vmem:[%s2 + $0x14] sm:$0xf]
    %v77 = vld [vmem:[%s2 + $0x18] sm:$0xf]
    %v78 = vld [vmem:[%s2 + $0x1c] sm:$0xf]
    %v79 = vld [vmem:[%s2 + $0x20] sm:$0xf]
    %v80 = vld [vmem:[%s2 + $0x24] sm:$0xf]
    %v81 = vld [vmem:[%s2 + $0x28] sm:$0xf]
    %v82 = vld [vmem:[%s2 + $0x2c] sm:$0xf]
    %v83 = vld [vmem:[%s2 + $0x30] sm:$0xf]
    %v84 = vld [vmem:[%s2 + $0x34] sm:$0xf]
    %v85 = vld [vmem:[%s2 + $0x38] sm:$0xf]
    %v86 = vld [vmem:[%s2 + $0x3c] sm:$0xf]
    %v103 = vunpack.c.l.b16 %v71
    %v104 = vunpack.c.l.b16 %v72
    %v105 = vunpack.c.l.b16 %v73
    %v106 = vunpack.c.l.b16 %v74
    %v107 = vunpack.c.l.b16 %v75
    %v108 = vunpack.c.l.b16 %v76
    %v109 = vunpack.c.l.b16 %v77
    %v110 = vunpack.c.l.b16 %v78
    %v111 = vunpack.c.l.b16 %v79
    %v112 = vunpack.c.l.b16 %v80
    %v113 = vunpack.c.l.b16 %v81
    %v114 = vunpack.c.l.b16 %v82
    %v115 = vunpack.c.l.b16 %v83
    %v116 = vunpack.c.l.b16 %v84
    %v117 = vunpack.c.l.b16 %v85
    %v118 = vunpack.c.l.b16 %v86
    %v119 = vpack.c.b16 %v104, %v103
    %v120 = vpack.c.b16 %v106, %v105
    %v121 = vpack.c.b16 %v108, %v107
    %v122 = vpack.c.b16 %v110, %v109
    %v123 = vpack.c.b16 %v112, %v111
    %v124 = vpack.c.b16 %v114, %v113
    %v125 = vpack.c.b16 %v116, %v115
    %v126 = vpack.c.b16 %v118, %v117
    %135 = vmatpush.bf16.msra.mxu0 %v126
    %136 = vmatpush.bf16.msra.mxu0 %v125
    %137 = vmatpush.bf16.msra.mxu0 %v124
    %138 = vmatpush.bf16.msra.mxu0 %v123
    %139 = vmatpush.bf16.msra.mxu0 %v122
    %140 = vmatpush.bf16.msra.mxu0 %v121
    %141 = vmatpush.bf16.msra.mxu0 %v120
    %142 = vmatpush.bf16.msra.mxu0 %v119
    %143 = vmatmul.bf16.gmra.mxu0 %v70
    %v144 = vpop.f32.mrf.mxu0
    %v145 = vadd.f32 0.0, %v144
    %v146 = vpop.f32.mrf.mxu0
    %v147 = vadd.f32 0.0, %v146
    %148 = vdwg.mxu0
    %v149 = vadd.f32 %v68, %v145
    %v150 = vadd.f32 %v69, %v147
    %151 = vst.msk [vmem:[#allocation2] sm:$0xff] %vm46, %v149
    %152 = vst.msk [vmem:[#allocation2 + $0x8] sm:$0xff] %vm46, %v150
    // Predicated region
    $region18: #{tpu_custom_call.1} parent=1 // pred_check
      %p153 = pneg %p16
    $region19: #{tpu_custom_call.1} parent=1 // pred_check_branch
      %155 = sbr.rel (%p153) target = $region21
    $region20: #{tpu_custom_call.1} parent=1 // pred_region
      %v156 = vld [vmem:[#allocation2] sm:$0xff]
      %v157 = vld [vmem:[#allocation2 + $0x8] sm:$0xff]
      %v158 = vpack.c.bf16 %v156, %v156
      %v159 = vpack.c.bf16 %v157, %v157
      %vm160 = vcmask 257024
      %161 = vst.msk [vmem:[#allocation3] sm:$0xf] %vm160, %v158
      %162 = vst.msk [vmem:[#allocation3 + $0x4] sm:$0xf] %vm160, %v159
    $region21: #{tpu_custom_call.1} parent=1 // pred_fallthru
      _
    // Predicated region
    $region22: #{tpu_custom_call.1} parent=1 // pred_check
      _
    $region23: #{tpu_custom_call.1} parent=1 // pred_check_branch
      %164 = sbr.rel (0) target = $region25
    $region24: #{tpu_custom_call.1} parent=1 // pred_region
      %166 = vsyncadd [#allocation4], 0
      %s167 = sshll.u32 [#allocation3], 4
      %s168 = int_to_ptr.vmem [resolvable:$true] %s167
      %s169 = sshll.u32 %s3, 4
      %s170 = int_to_ptr.hbm [resolvable:$true] %s169
      %175 = dma.vmem_to_hbm [thread:$0]  %s168, 128, %s170, [#allocation4], 64, 64, 4
    $region25: #{tpu_custom_call.1} parent=1 // pred_fallthru
      _
    // Predicated region
    $region26: #{tpu_custom_call.1} parent=1 // pred_check
      _
    $region27: #{tpu_custom_call.1} parent=1 // pred_check_branch
      %177 = sbr.rel (0) target = $region29
    $region28: #{tpu_custom_call.1} parent=1 // pred_region
      %179 = dma.done [#allocation4], 128
    $region29: #{tpu_custom_call.1} parent=1 // pred_fallthru
      _
    %180 = vsyncpa [#allocation4], 1

</llo_original>
